<compile_context>
chip_gen: v6e
topology: v6e:2x2x1
jax: 0.10.0
libtpu: 0.0.40
codegen_flags: <defaults>
</compile_context>

<pallas_src>
import functools

import numpy as np
import jax
import jax.numpy as jnp
from jax import lax
from jax.experimental import pallas as pl
from jax.experimental.pallas import tpu as pltpu


def _round_up(x, m):
    return ((x + m - 1) // m) * m


# ---------------------------------------------------------------------------
# Kernel A (small Cin, this toy case): im2col via static lane-offset taps
# ("flat shift" trick) + ONE MXU matmul folding all KH*KW taps, all input
# channels AND the bias (ones block) into the contraction.
#   x_ref  : (1, Cin_p, slab_pad)   bf16, per-tile slab (halo included)
#   w_ref  : (Cout, K)              bf16, K = (KH*KW + 1) * Cin_p (bias block)
#   o_ref  : (1, Cout, tile_lw)     f32, lane-dense (tile_lw % 128 == 0)
#   col_ref: (K, tile_lw)           bf16 VMEM scratch (im2col buffer)
# ---------------------------------------------------------------------------
def _upconv_kernel_im2col(x_ref, w_ref, o_ref, col_ref, *, taps, cin_p, tile_lw):
    # Each conv tap is a contiguous lane-offset slice of the flattened padded
    # image; writes land at 16-aligned sublane offsets (bf16 packing).
    for t, off in enumerate(taps):                       # unrolled, static
        col_ref[pl.ds(t * cin_p, cin_p), :] = x_ref[0, :, pl.ds(off, tile_lw)]
    # Bias fold: an all-ones block; only column 0 of the matching weight
    # block carries the bias, the rest is zero.
    col_ref[pl.ds(len(taps) * cin_p, cin_p), :] = jnp.ones(
        (cin_p, tile_lw), dtype=col_ref.dtype)
    # One bf16 MXU matmul, f32 accumulation: (Cout, K) x (K, tile_lw).
    acc = jnp.dot(w_ref[...], col_ref[...], preferred_element_type=jnp.float32)
    o_ref[0] = acc.astype(o_ref.dtype)                   # lane-dense store


# ---------------------------------------------------------------------------
# Kernel B (production Cin_p >= 128 / v7x): no im2col scratch at all --
# KH*KW accumulating dots on shifted lane slices.  Contraction depth stays
# Cin_p >= 128 so the MXU remains fed, and the (K, LW) scratch plus ~9x of
# VMEM<->VMEM copy traffic disappear (critical under v7x's 64 MiB VMEM).
#   w_ref : (KH*KW, Cout, Cin_p) bf16      b_ref : (Cout, 1) f32
# ---------------------------------------------------------------------------
def _upconv_kernel_pertap(x_ref, w_ref, b_ref, o_ref, *, taps, cout, tile_lw):
    acc = jnp.zeros((cout, tile_lw), jnp.float32)
    for t, off in enumerate(taps):                       # unrolled, static
        acc = acc + jnp.dot(w_ref[t], x_ref[0, :, pl.ds(off, tile_lw)],
                            preferred_element_type=jnp.float32)
    o_ref[0] = (acc + b_ref[...]).astype(o_ref.dtype)


def _pick_tile_lw(n_out_flat, max_off, cin_p, cout, k_col, tile_lw_max,
                  vmem_budget=40 * 1024 * 1024):
    """Largest 128-multiple spatial tile whose working set fits the budget."""
    tile = min(_round_up(n_out_flat, 128), max(128, _round_up(tile_lw_max, 128)))
    while tile > 128:
        slab = _round_up(tile + max_off, 128)
        need = (2 * cin_p * slab * 2          # double-buffered bf16 input block
                + 2 * cout * tile * 4         # double-buffered f32 output block
                + k_col * tile * 2            # im2col scratch (bf16)
                + 2 * cout * k_col * 2)       # resident weights
        if need <= vmem_budget:
            break
        tile -= 128
    return tile


def _upsample_conv_pallas(xslab, w2, w_taps, bias_f32, *, use_im2col, taps,
                          cin_p, cout, tile_lw, slab_pad, n_tiles):
    n = xslab.shape[0]
    lw_total = n_tiles * tile_lw
    ntaps = len(taps)

    x_spec = pl.BlockSpec((1, cin_p, slab_pad), lambda b, j: (b, 0, j))
    out_spec = pl.BlockSpec((1, cout, tile_lw), lambda b, j: (b, 0, j))

    if use_im2col:
        k = w2.shape[1]
        kernel = functools.partial(_upconv_kernel_im2col, taps=taps,
                                   cin_p=cin_p, tile_lw=tile_lw)
        in_specs = [x_spec,
                    pl.BlockSpec((cout, k), lambda b, j: (0, 0))]    # resident
        scratch = [pltpu.VMEM((k, tile_lw), jnp.bfloat16)]
        operands = (xslab, w2)
        flops = 2 * n * n_tiles * cout * k * tile_lw
    else:
        kernel = functools.partial(_upconv_kernel_pertap, taps=taps,
                                   cout=cout, tile_lw=tile_lw)
        in_specs = [x_spec,
                    pl.BlockSpec((ntaps, cout, cin_p), lambda b, j: (0, 0, 0)),
                    pl.BlockSpec((cout, 1), lambda b, j: (0, 0))]
        scratch = []
        operands = (xslab, w_taps, bias_f32)
        flops = 2 * n * n_tiles * cout * ntaps * cin_p * tile_lw

    bytes_accessed = int(xslab.size * 2 + w2.size * 2 + n * cout * lw_total * 4)

    return pl.pallas_call(
        kernel,
        out_shape=jax.ShapeDtypeStruct((n, cout, lw_total), jnp.float32),
        grid_spec=pltpu.PrefetchScalarGridSpec(
            num_scalar_prefetch=0,
            grid=(n, n_tiles),
            in_specs=in_specs,
            out_specs=out_spec,
            scratch_shapes=scratch,
        ),
        compiler_params=pltpu.CompilerParams(
            # Both axes "parallel": shards batch AND spatial tiles across the
            # 2 TensorCores on v7x even when N == 1.
            dimension_semantics=("parallel", "parallel"),
            # Explicit scoped-VMEM ceiling with headroom for v7x (64 MiB phys).
            vmem_limit_bytes=48 * 1024 * 1024,
        ),
        cost_estimate=pl.CostEstimate(
            flops=flops, transcendentals=0, bytes_accessed=bytes_accessed),
    )(*operands)


def _pack_weights(w_oihw, bias_vec, cin_p):
    cout, cin, kh, kw = w_oihw.shape
    w_perm = jnp.transpose(w_oihw, (0, 2, 3, 1))                 # (cout,kh,kw,cin)
    w_perm = jnp.pad(w_perm, ((0, 0), (0, 0), (0, 0), (0, cin_p - cin)))
    # im2col layout, bias folded: extra cin_p-wide block whose first column
    # carries the bias (kernel supplies the matching all-ones col block).
    w_flat = w_perm.reshape(cout, kh * kw * cin_p)
    bias_blk = jnp.zeros((cout, cin_p), w_flat.dtype).at[:, 0].set(bias_vec)
    w2 = jnp.concatenate([w_flat, bias_blk], axis=1).astype(jnp.bfloat16)
    # per-tap layout for the scratch-free kernel variant
    w_taps = jnp.transpose(w_perm.reshape(cout, kh * kw, cin_p),
                           (1, 0, 2)).astype(jnp.bfloat16)
    return w2, w_taps


# ---------------------------------------------------------------------------
# Wrapper: DecUpsampleBlock forward ('nn' upsample path), NCHW in/out.
# ---------------------------------------------------------------------------
def dec_upsample_block(x_nchw, params, *, kernel_size, stride, dilation,
                       upsample_type="nn", use_im2col=None, tile_lw_max=512):
    if upsample_type != "nn":
        # TODO(synk): 'bilinear', 'subpixel' (PixelShuffle + avg_blur) and
        # 'deconv' upsample paths are not implemented; only the 'nn' branch.
        raise NotImplementedError(upsample_type)
    if stride != 1:
        # TODO(synk): stride > 1 not supported by the flat-shift im2col path.
        raise NotImplementedError("stride must be 1")

    n, cin, h, w = x_nchw.shape
    w_oihw, bias_vec = params["w_oihw"], params["bias"]
    cout = w_oihw.shape[0]
    kh = kw = kernel_size
    d = dilation
    pad = (kernel_size + (kernel_size - 1) * (dilation - 1) - 1) // 2

    h2, w2s = 2 * h, 2 * w                         # nearest x2 upsampled size
    hp, wp = h2 + 2 * pad, w2s + 2 * pad           # after reflection pad
    ho, wo = hp - d * (kh - 1), wp - d * (kw - 1)  # conv 'valid' output
    n_out_flat = ho * wp                           # flat output incl. wrap cols

    cin_p = _round_up(cin, 16)                     # 16: bf16 sublane packing
    ntaps = kh * kw
    taps = tuple(int(i * d * wp + j * d) for i in range(kh) for j in range(kw))
    max_off = taps[-1]
    k_col = (ntaps + 1) * cin_p                    # +1 block = folded bias

    if use_im2col is None:
        # Per review: the single-dot im2col fold only pays off for tiny Cin;
        # at production channel counts drop the scratch for per-tap dots.
        use_im2col = cin_p < 128

    tile_lw = _pick_tile_lw(n_out_flat, max_off, cin_p, cout, k_col, tile_lw_max)
    n_tiles = -(-n_out_flat // tile_lw)
    slab_pad = _round_up(tile_lw + max_off, 128)

    # Trace-time constant spatial remap: nearest-x2 upsample + reflection pad
    # + per-tile slab extraction (conv halo included) folded into ONE gather.
    def _reflect(i, size):
        i = np.abs(i)
        return np.where(i >= size, 2 * size - 2 - i, i)

    src_h = _reflect(np.arange(hp) - pad, h2) // 2          # (Hp,)
    src_w = _reflect(np.arange(wp) - pad, w2s) // 2         # (Wp,)
    pad_src = (src_h[:, None] * w + src_w[None, :]).reshape(-1)   # (Hp*Wp,)

    base = np.arange(slab_pad)
    idx = np.zeros((n_tiles, slab_pad), np.int64)
    for j in range(n_tiles):
        p = j * tile_lw + base
        safe = np.minimum(p, hp * wp - 1)
        idx[j] = np.where(p < hp * wp, pad_src[safe], 0)    # junk lanes -> 0
    idx = jnp.asarray(idx.reshape(-1).astype(np.int32))

    # bf16 activations; channels padded on the SMALL pre-gather input, then a
    # single gather lands the slabs directly in the kernel's
    # (N, Cin_p, tiles*slab) channel-major, lane-dense layout.
    # TODO(synk): at production resolutions replace this HBM-materialized 4x
    # upsampled intermediate with a sub-pixel (phase) weight decomposition or
    # in-kernel row DMA (memory_space=pl.ANY + scalar-prefetched row table).
    xsrc = jnp.pad(x_nchw.astype(jnp.bfloat16),
                   ((0, 0), (0, cin_p - cin), (0, 0), (0, 0)))
    xsrc = xsrc.reshape(n, cin_p, h * w)
    xslab = jnp.take(xsrc, idx, axis=2, mode="clip")  # (N, Cin_p, tiles*slab)

    w2, w_taps = _pack_weights(w_oihw, bias_vec, cin_p)
    bias_f32 = bias_vec.reshape(cout, 1).astype(jnp.float32)

    out_wide = _upsample_conv_pallas(
        xslab, w2, w_taps, bias_f32, use_im2col=use_im2col, taps=taps,
        cin_p=cin_p, cout=cout, tile_lw=tile_lw, slab_pad=slab_pad,
        n_tiles=n_tiles)

    # Trim lane padding + the (Wp - Wo) wrap-around columns.
    # TODO(synk): for fused consumers, hand them the lane-dense (Ho, Wp)
    # layout instead of paying this strided-trim HBM pass.
    out = out_wide[:, :, :n_out_flat].reshape(n, cout, ho, wp)[:, :, :, :wo]
    return out                                      # (N, Cout, 2H, 2W), NCHW


# ---------------------------------------------------------------------------
# Parameter setup (plain JAX): deterministic weights + spectral norm.
# ---------------------------------------------------------------------------
def spectral_normalize(w_oihw, u, n_power_iterations=1, eps=1e-12):
    """Mimics torch.nn.utils.spectral_norm forward (power iteration)."""
    cout = w_oihw.shape[0]
    w_mat = w_oihw.reshape(cout, -1)

    def _l2n(v):
        return v / (jnp.linalg.norm(v) + eps)

    v = None
    for _ in range(n_power_iterations):
        v = _l2n(w_mat.T @ u)
        u = _l2n(w_mat @ v)
    sigma = u @ (w_mat @ v)
    return w_oihw / sigma


def init_params(key, in_channels, out_channels, kernel_size,
                use_bias=True, use_sn=True):
    k_w, k_u, k_b = jax.random.split(key, 3)
    # Torch conv weight layout (Cout, Cin, KH, KW)
    w_oihw = 0.1 * jax.random.normal(
        k_w, (out_channels, in_channels, kernel_size, kernel_size), jnp.float32)
    if use_sn:
        u0 = jax.random.normal(k_u, (out_channels,), jnp.float32)
        u0 = u0 / (jnp.linalg.norm(u0) + 1e-12)
        # TODO(synk): torch's spectral_norm carries a persistent `u` buffer;
        # this one-shot power iteration only matches a fresh init.
        w_oihw = spectral_normalize(w_oihw, u0)
    bias = (0.05 * jax.random.normal(k_b, (out_channels,), jnp.float32)
            if use_bias else jnp.zeros((out_channels,), jnp.float32))
    return {"w_oihw": w_oihw, "bias": bias}


if __name__ == "__main__":
    # DecUpsampleBlock(in_channels=4, out_channels=8, kernel_size=3, stride=1,
    #                  padding=0, dilation=1, use_bias=True, use_sn=True,
    #                  upsample_type='nn')
    in_channels, out_channels = 4, 8
    kernel_size, stride, dilation = 3, 1, 1

    key = jax.random.PRNGKey(0)
    k_x, k_p = jax.random.split(key)
    x = jax.random.normal(k_x, (2, in_channels, 16, 16), jnp.float32)   # NCHW

    params = init_params(k_p, in_channels, out_channels, kernel_size,
                         use_bias=True, use_sn=True)

    common = dict(kernel_size=kernel_size, stride=stride, dilation=dilation,
                  upsample_type="nn")
    fwd = jax.jit(functools.partial(dec_upsample_block, **common))
    fwd_pertap = jax.jit(functools.partial(                  # big-Cin/v7x path
        dec_upsample_block, use_im2col=False, **common))

    out = jax.block_until_ready(fwd(x, params))
    out_pt = jax.block_until_ready(fwd_pertap(x, params))
    assert out.shape == (2, out_channels, 32, 32), out.shape
    assert out_pt.shape == (2, out_channels, 32, 32), out_pt.shape

    # Plain-JAX f32 reference (nearest x2 -> reflect pad -> valid conv + bias).
    pad = (kernel_size + (kernel_size - 1) * (dilation - 1) - 1) // 2
    x_up = jnp.repeat(jnp.repeat(x, 2, axis=2), 2, axis=3)
    x_pd = jnp.pad(x_up, ((0, 0), (0, 0), (pad, pad), (pad, pad)),
                   mode="reflect")
    ref = lax.conv_general_dilated(
        x_pd, params["w_oihw"], window_strides=(stride, stride),
        padding="VALID", rhs_dilation=(dilation, dilation),
        dimension_numbers=("NCHW", "OIHW", "NCHW"),
        precision=lax.Precision.HIGHEST,
    ) + params["bias"].reshape(1, out_channels, 1, 1)

    # bf16 operands (f32 accumulation) -> tolerance loosened vs the f32 ref.
    np.testing.assert_allclose(np.asarray(out), np.asarray(ref),
                               rtol=2e-2, atol=2e-2)
    np.testing.assert_allclose(np.asarray(out_pt), np.asarray(ref),
                               rtol=2e-2, atol=2e-2)
    print("KERNEL_OK")
</pallas_src>

<mosaic_0001>
module attributes {stable_mosaic.version = 11 : i64} {
  func.func @_upconv_kernel_im2col(%arg0: i32, %arg1: i32, %arg2: memref<1x16x640xbf16, #tpu.memory_space<vmem>>, %arg3: memref<8x160xbf16, #tpu.memory_space<vmem>>, %arg4: memref<1x8x512xf32, #tpu.memory_space<vmem>>, %arg5: memref<160x512xbf16, #tpu.memory_space<vmem>>) attributes {dimension_semantics = [#tpu.dimension_semantics<parallel>, #tpu.dimension_semantics<parallel>], iteration_bounds = array<i64: 2, 3>, scalar_prefetch = 0 : i64, scratch_operands = 1 : i64, tpu.core_type = #tpu.core_type<tc>, window_params = [{transform_indices = @transform_0, window_bounds = array<i64: 1, 16, 640>}, {pipeline_mode = #tpu.pipeline_mode<synchronous>, transform_indices = @transform_1, window_bounds = array<i64: 8, 160>}, {transform_indices = @transform_2, window_bounds = array<i64: 1, 8, 512>}]} {
    %c0 = arith.constant 0 : index
    %c0_0 = arith.constant 0 : index
    %c0_1 = arith.constant 0 : index
    %0 = vector.load %arg2[%c0, %c0_0, %c0_1] : memref<1x16x640xbf16, #tpu.memory_space<vmem>>, vector<1x16x512xbf16>
    %1 = vector.shape_cast %0 : vector<1x16x512xbf16> to vector<16x512xbf16>
    %c0_2 = arith.constant 0 : index
    %c0_3 = arith.constant 0 : index
    %2 = vector.load %arg5[%c0_2, %c0_3] : memref<160x512xbf16, #tpu.memory_space<vmem>>, vector<16x512xbf16>
    tpu.vector_store %arg5[%c0_2, %c0_3], %1 {strides = array<i32>} : memref<160x512xbf16, #tpu.memory_space<vmem>>, vector<16x512xbf16>,
    %c0_4 = arith.constant 0 : index
    %c0_5 = arith.constant 0 : index
    %c1 = arith.constant 1 : index
    %3 = vector.load %arg2[%c0_4, %c0_5, %c1] : memref<1x16x640xbf16, #tpu.memory_space<vmem>>, vector<1x16x512xbf16>
    %4 = vector.shape_cast %3 : vector<1x16x512xbf16> to vector<16x512xbf16>
    %c16 = arith.constant 16 : index
    %c0_6 = arith.constant 0 : index
    %5 = vector.load %arg5[%c16, %c0_6] : memref<160x512xbf16, #tpu.memory_space<vmem>>, vector<16x512xbf16>
    tpu.vector_store %arg5[%c16, %c0_6], %4 {strides = array<i32>} : memref<160x512xbf16, #tpu.memory_space<vmem>>, vector<16x512xbf16>,
    %c0_7 = arith.constant 0 : index
    %c0_8 = arith.constant 0 : index
    %c2 = arith.constant 2 : index
    %6 = vector.load %arg2[%c0_7, %c0_8, %c2] : memref<1x16x640xbf16, #tpu.memory_space<vmem>>, vector<1x16x512xbf16>
    %7 = vector.shape_cast %6 : vector<1x16x512xbf16> to vector<16x512xbf16>
    %c32 = arith.constant 32 : index
    %c0_9 = arith.constant 0 : index
    %8 = vector.load %arg5[%c32, %c0_9] : memref<160x512xbf16, #tpu.memory_space<vmem>>, vector<16x512xbf16>
    tpu.vector_store %arg5[%c32, %c0_9], %7 {strides = array<i32>} : memref<160x512xbf16, #tpu.memory_space<vmem>>, vector<16x512xbf16>,
    %c0_10 = arith.constant 0 : index
    %c0_11 = arith.constant 0 : index
    %c34 = arith.constant 34 : index
    %9 = vector.load %arg2[%c0_10, %c0_11, %c34] : memref<1x16x640xbf16, #tpu.memory_space<vmem>>, vector<1x16x512xbf16>
    %10 = vector.shape_cast %9 : vector<1x16x512xbf16> to vector<16x512xbf16>
    %c48 = arith.constant 48 : index
    %c0_12 = arith.constant 0 : index
    %11 = vector.load %arg5[%c48, %c0_12] : memref<160x512xbf16, #tpu.memory_space<vmem>>, vector<16x512xbf16>
    tpu.vector_store %arg5[%c48, %c0_12], %10 {strides = array<i32>} : memref<160x512xbf16, #tpu.memory_space<vmem>>, vector<16x512xbf16>,
    %c0_13 = arith.constant 0 : index
    %c0_14 = arith.constant 0 : index
    %c35 = arith.constant 35 : index
    %12 = vector.load %arg2[%c0_13, %c0_14, %c35] : memref<1x16x640xbf16, #tpu.memory_space<vmem>>, vector<1x16x512xbf16>
    %13 = vector.shape_cast %12 : vector<1x16x512xbf16> to vector<16x512xbf16>
    %c64 = arith.constant 64 : index
    %c0_15 = arith.constant 0 : index
    %14 = vector.load %arg5[%c64, %c0_15] : memref<160x512xbf16, #tpu.memory_space<vmem>>, vector<16x512xbf16>
    tpu.vector_store %arg5[%c64, %c0_15], %13 {strides = array<i32>} : memref<160x512xbf16, #tpu.memory_space<vmem>>, vector<16x512xbf16>,
    %c0_16 = arith.constant 0 : index
    %c0_17 = arith.constant 0 : index
    %c36 = arith.constant 36 : index
    %15 = vector.load %arg2[%c0_16, %c0_17, %c36] : memref<1x16x640xbf16, #tpu.memory_space<vmem>>, vector<1x16x512xbf16>
    %16 = vector.shape_cast %15 : vector<1x16x512xbf16> to vector<16x512xbf16>
    %c80 = arith.constant 80 : index
    %c0_18 = arith.constant 0 : index
    %17 = vector.load %arg5[%c80, %c0_18] : memref<160x512xbf16, #tpu.memory_space<vmem>>, vector<16x512xbf16>
    tpu.vector_store %arg5[%c80, %c0_18], %16 {strides = array<i32>} : memref<160x512xbf16, #tpu.memory_space<vmem>>, vector<16x512xbf16>,
    %c0_19 = arith.constant 0 : index
    %c0_20 = arith.constant 0 : index
    %c68 = arith.constant 68 : index
    %18 = vector.load %arg2[%c0_19, %c0_20, %c68] : memref<1x16x640xbf16, #tpu.memory_space<vmem>>, vector<1x16x512xbf16>
    %19 = vector.shape_cast %18 : vector<1x16x512xbf16> to vector<16x512xbf16>
    %c96 = arith.constant 96 : index
    %c0_21 = arith.constant 0 : index
    %20 = vector.load %arg5[%c96, %c0_21] : memref<160x512xbf16, #tpu.memory_space<vmem>>, vector<16x512xbf16>
    tpu.vector_store %arg5[%c96, %c0_21], %19 {strides = array<i32>} : memref<160x512xbf16, #tpu.memory_space<vmem>>, vector<16x512xbf16>,
    %c0_22 = arith.constant 0 : index
    %c0_23 = arith.constant 0 : index
    %c69 = arith.constant 69 : index
    %21 = vector.load %arg2[%c0_22, %c0_23, %c69] : memref<1x16x640xbf16, #tpu.memory_space<vmem>>, vector<1x16x512xbf16>
    %22 = vector.shape_cast %21 : vector<1x16x512xbf16> to vector<16x512xbf16>
    %c112 = arith.constant 112 : index
    %c0_24 = arith.constant 0 : index
    %23 = vector.load %arg5[%c112, %c0_24] : memref<160x512xbf16, #tpu.memory_space<vmem>>, vector<16x512xbf16>
    tpu.vector_store %arg5[%c112, %c0_24], %22 {strides = array<i32>} : memref<160x512xbf16, #tpu.memory_space<vmem>>, vector<16x512xbf16>,
    %c0_25 = arith.constant 0 : index
    %c0_26 = arith.constant 0 : index
    %c70 = arith.constant 70 : index
    %24 = vector.load %arg2[%c0_25, %c0_26, %c70] : memref<1x16x640xbf16, #tpu.memory_space<vmem>>, vector<1x16x512xbf16>
    %25 = vector.shape_cast %24 : vector<1x16x512xbf16> to vector<16x512xbf16>
    %c128 = arith.constant 128 : index
    %c0_27 = arith.constant 0 : index
    %26 = vector.load %arg5[%c128, %c0_27] : memref<160x512xbf16, #tpu.memory_space<vmem>>, vector<16x512xbf16>
    tpu.vector_store %arg5[%c128, %c0_27], %25 {strides = array<i32>} : memref<160x512xbf16, #tpu.memory_space<vmem>>, vector<16x512xbf16>,
    %cst = arith.constant 1.000000e+00 : bf16
    %27 = vector.broadcast %cst : bf16 to vector<16x512xbf16>
    %c144 = arith.constant 144 : index
    %c0_28 = arith.constant 0 : index
    %28 = vector.load %arg5[%c144, %c0_28] : memref<160x512xbf16, #tpu.memory_space<vmem>>, vector<16x512xbf16>
    tpu.vector_store %arg5[%c144, %c0_28], %27 {strides = array<i32>} : memref<160x512xbf16, #tpu.memory_space<vmem>>, vector<16x512xbf16>,
    %c0_29 = arith.constant 0 : index
    %c0_30 = arith.constant 0 : index
    %29 = vector.load %arg3[%c0_29, %c0_30] : memref<8x160xbf16, #tpu.memory_space<vmem>>, vector<8x160xbf16>
    %c0_31 = arith.constant 0 : index
    %c0_32 = arith.constant 0 : index
    %30 = vector.load %arg5[%c0_31, %c0_32] : memref<160x512xbf16, #tpu.memory_space<vmem>>, vector<160x512xbf16>
    %cst_33 = arith.constant dense<0.000000e+00> : vector<8x512xf32>
    %31 = tpu.matmul %29, %30, %cst_33 {dimension_numbers = #tpu.dot_dimension_numbers<[1], [0], [0], [1], [0, 0, 1, 1], [], []>} : vector<8x160xbf16>, vector<160x512xbf16>, vector<8x512xf32> -> vector<8x512xf32>
    %c0_34 = arith.constant 0 : index
    %c0_35 = arith.constant 0 : index
    %c0_36 = arith.constant 0 : index
    %32 = vector.load %arg4[%c0_34, %c0_35, %c0_36] : memref<1x8x512xf32, #tpu.memory_space<vmem>>, vector<1x8x512xf32>
    %33 = vector.shape_cast %32 : vector<1x8x512xf32> to vector<8x512xf32>
    %34 = vector.shape_cast %31 : vector<8x512xf32> to vector<1x8x512xf32>
    tpu.vector_store %arg4[%c0_34, %c0_35, %c0_36], %34 {strides = array<i32>} : memref<1x8x512xf32, #tpu.memory_space<vmem>>, vector<1x8x512xf32>,
    return
  }
  func.func @transform_0(%arg0: i32, %arg1: i32) -> (i32, i32, i32) {
    %c0_i32 = arith.constant 0 : i32
    %c0_i32_0 = arith.constant 0 : i32
    return %arg0, %c0_i32, %arg1 : i32, i32, i32
  }
  func.func @transform_1(%arg0: i32, %arg1: i32) -> (i32, i32) {
    %c0_i32 = arith.constant 0 : i32
    %c0_i32_0 = arith.constant 0 : i32
    %c0_i32_1 = arith.constant 0 : i32
    return %c0_i32, %c0_i32_0 : i32, i32
  }
  func.func @transform_2(%arg0: i32, %arg1: i32) -> (i32, i32, i32) {
    %c0_i32 = arith.constant 0 : i32
    %c0_i32_0 = arith.constant 0 : i32
    return %arg0, %c0_i32, %arg1 : i32, i32, i32
  }
}

</mosaic_0001>

<llo_original>
// kernel: dec_upsample_block.1
$region0: #{dec_upsample_block.1}
  #allocation0 [shape = 'u32[]', space=smem, size = 0x4, offset = 0x4, fixed_abs, tag = 'smem constant byte address 0x4 - core index']
  #allocation1 [shape = 'u32[144,128]{1,0:T(1,128)}', space=vmem, size = 0x12000, scoped, tag = 'internal scratch']
  #allocation2 [shape = 'bf16[160,512]{1,0:T(8,128)(2,1)}', space=vmem, size = 0x28000, scoped, tag = 'scratch operand']
  %s0 = inlined_call_operand.vmem [shape: bf16[2,16,1920], index: 0, kind: input, shape index: {}]
  %s1 = inlined_call_operand.vmem [shape: bf16[8,160], index: 1, kind: input, shape index: {}]
  %s2 = inlined_call_operand.vmem [shape: f32[2,8,1536], index: 2, kind: output, shape index: {}]
  %s3 = sld [smem:[#allocation0]]
  $region67: #{dec_upsample_block.1} parent=0
    _
  %s5 = ssub.s32 1, %s3
  %s6 = scalar_select 0, %s5, %s3
  $region1: #{dec_upsample_block.1} parent=0
    #allocation3 [shape = 'u8[40960]{0}', space=vmem, size = 0xa000, scoped, tag = 'input window, operand 0']
    loop: start=0, step=1, limit=8
    $region2: #{dec_upsample_block.1} parent=1 // loop_pre_header
      _
    $region3: #{dec_upsample_block.1} parent=1 // loop_header
      %s8 = sphi 0, %s12
      %p9 = scmp.ge.s32.totalorder %s8, 8
      %s15 = sphi 0, %s27
      %s16 = sphi 0, %s23
      %s17 = sphi 0, %s15
      %s18 = sphi 0, %s16
      %s19 = sphi 0, %s17
      %s20 = sphi 0, %s18
      %s32 = sphi 0, %s34
      %s35 = sphi 0, %s32
      %s36 = sphi 0, %s35
      %s52 = sphi 0, %s36
      %s56 = sphi 0, %s56
      %s58 = sphi 0, %s56
      %s59 = sphi 0, %s58
      %s73 = sphi 0, %s59
      %s81 = sphi 0, %s83
      %s84 = sphi 0, %s81
      %s85 = sphi 0, %s84
      %s101 = sphi 0, %s85
    $region4: #{dec_upsample_block.1} parent=1 // loop_header_branch
      %11 = sbr.rel (%p9) target = $region8
    $region5: #{dec_upsample_block.1} parent=1 // loop_body
      %s13 = ssub.s32 %s8, 1
      %s14 = ssub.s32 %s8, 2
      %s21 = sadd.s32 1, %s16
      %p22 = scmp.ge.s32.totalorder %s21, 3
      %s23 = scalar_select %p22, 0, %s21
      %s24 = sadd.s32 1, %s15
      %s25 = scalar_select %p22, %s24, %s15
      %p26 = scmp.ge.s32.totalorder %s25, 2
      %s27 = scalar_select %p26, 0, %s25
      %s28 = ssub.s32 %s15, %s27
      %s29 = ssub.s32 %s16, %s23
      %s30 = sor.u32 %s28, %s29
      %p31 = scmp.eq.s32.totalorder %s30, 0
      %s33 = sadd.s32 %s32, 1
      %s34 = scalar_select %p31, %s32, %s33
      %p37 = pneg %p31
      %p38 = scmp.eq.s32.totalorder %s8, 5
      %p39 = por %p37, %p38
      %p40 = scmp.ne.s32.totalorder %s32, %s35
      %p41 = scmp.eq.s32.totalorder %s8, 0
      %p42 = por %p40, %p41
      %p43 = scmp.ne.s32.totalorder %s32, %s35
      %p44 = scmp.eq.s32.totalorder %s13, 5
      %p45 = por %p43, %p44
      %p46 = scmp.ne.s32.totalorder %s35, %s36
      %p47 = scmp.eq.s32.totalorder %s13, 0
      %p48 = por %p46, %p47
      %p49 = scmp.ne.s32.totalorder %s35, %s36
      %p50 = scmp.eq.s32.totalorder %s14, 5
      %p51 = por %p49, %p50
      %p53 = scmp.ne.s32.totalorder %s36, %s52
      %p54 = scmp.eq.s32.totalorder %s14, 0
      %p55 = por %p53, %p54
      %s57 = sadd.s32 %s56, 1
      %p60 = scmp.eq.s32.totalorder %s8, 5
      %p61 = scmp.ne.s32.totalorder %s56, %s58
      %p62 = scmp.eq.s32.totalorder %s8, 0
      %p63 = por %p61, %p62
      %p64 = scmp.ne.s32.totalorder %s56, %s58
      %p65 = scmp.eq.s32.totalorder %s13, 5
      %p66 = por %p64, %p65
      %p67 = scmp.ne.s32.totalorder %s58, %s59
      %p68 = scmp.eq.s32.totalorder %s13, 0
      %p69 = por %p67, %p68
      %p70 = scmp.ne.s32.totalorder %s58, %s59
      %p71 = scmp.eq.s32.totalorder %s14, 5
      %p72 = por %p70, %p71
      %p74 = scmp.ne.s32.totalorder %s59, %s73
      %p75 = scmp.eq.s32.totalorder %s14, 0
      %p76 = por %p74, %p75
      %s77 = ssub.s32 %s15, %s27
      %s78 = ssub.s32 %s16, %s23
      %s79 = sor.u32 %s77, %s78
      %p80 = scmp.eq.s32.totalorder %s79, 0
      %s82 = sadd.s32 %s81, 1
      %s83 = scalar_select %p80, %s81, %s82
      %p86 = pneg %p80
      %p87 = scmp.eq.s32.totalorder %s8, 5
      %p88 = por %p86, %p87
      %p89 = scmp.ne.s32.totalorder %s81, %s84
      %p90 = scmp.eq.s32.totalorder %s8, 0
      %p91 = por %p89, %p90
      %p92 = scmp.ne.s32.totalorder %s81, %s84
      %p93 = scmp.eq.s32.totalorder %s13, 5
      %p94 = por %p92, %p93
      %p95 = scmp.ne.s32.totalorder %s84, %s85
      %p96 = scmp.eq.s32.totalorder %s13, 0
      %p97 = por %p95, %p96
      %p98 = scmp.ne.s32.totalorder %s84, %s85
      %p99 = scmp.eq.s32.totalorder %s14, 5
      %p100 = por %p98, %p99
      %p102 = scmp.ne.s32.totalorder %s85, %s101
      %p103 = scmp.eq.s32.totalorder %s14, 0
      %p104 = por %p102, %p103
      %p105 = scmp.le.s32.totalorder 1, %s8
      %p106 = scmp.lt.s32.totalorder %s8, 7
      %p107 = pnand %p105, %p106
      %p108 = pneg %p107
      // Predicated region
      $region9: #{dec_upsample_block.1} parent=5 // pred_check
        _
      $region10: #{dec_upsample_block.1} parent=5 // pred_check_branch
        %110 = sbr.rel (%p107) target = $region12
      $region11: #{dec_upsample_block.1} parent=5 // pred_region
        %s111 = ssub.s32 %s8, 1
        // Predicated region
        $region13: #{dec_upsample_block.1} parent=11 // pred_check
          %p112 = pneg %p69
        $region14: #{dec_upsample_block.1} parent=11 // pred_check_branch
          %114 = sbr.rel (%p112) target = $region16
        $region15: #{dec_upsample_block.1} parent=11 // pred_region
          _
        $region16: #{dec_upsample_block.1} parent=11 // pred_fallthru
          _
      $region12: #{dec_upsample_block.1} parent=5 // pred_fallthru
        _
      %p115 = scmp.lt.s32.totalorder %s8, 6
      // Predicated region
      $region17: #{dec_upsample_block.1} parent=5 // pred_check
        %p116 = pneg %p115
      $region18: #{dec_upsample_block.1} parent=5 // pred_check_branch
        %118 = sbr.rel (%p116) target = $region20
      $region19: #{dec_upsample_block.1} parent=5 // pred_region
        // Predicated region
        $region21: #{dec_upsample_block.1} parent=19 // pred_check
          %p119 = pneg %p42
        $region22: #{dec_upsample_block.1} parent=19 // pred_check_branch
          %121 = sbr.rel (%p119) target = $region24
        $region23: #{dec_upsample_block.1} parent=19 // pred_region
          %s122 = sand.u32 %s32, 1
          %s123 = sand.u32 %s32, 1
          %s124 = smul.addr %s123, 40
          %s125 = scalar_lea.vmem [#allocation3], %s124
          %s126 = smul.u32 5, %s16
          %s127 = smul.addr %s15, 30
          %s128 = sadd.s32 %s126, %s127
          %s129 = smul.addr %s128, 4
          %s130 = scalar_lea.vmem %s0, %s129
          // Predicated region
          $region25: #{dec_upsample_block.1} parent=23 // pred_check
            _
          $region26: #{dec_upsample_block.1} parent=23 // pred_check_branch
            %132 = sbr.rel (0) target = $region28
          $region27: #{dec_upsample_block.1} parent=23 // pred_region
            // Predicated region
            $region29: #{dec_upsample_block.1} parent=27 // pred_check
              _
            $region30: #{dec_upsample_block.1} parent=27 // pred_check_branch
              %134 = sbr.rel (0) target = $region32
            $region31: #{dec_upsample_block.1} parent=27 // pred_region
              %s135 = scalar_lea.vmem %s130, 16
              %s136 = scalar_lea.vmem %s125, 16 [#allocation3]
              loop: start=0, step=1, limit=1
              $region33: #{dec_upsample_block.1} parent=31 // loop_pre_header
                _
              $region34: #{dec_upsample_block.1} parent=31 // loop_header
                %s138 = sphi 0, %s142
                %p139 = scmp.ge.s32.totalorder %s138, 1
                %s143 = sphi %s130, %s130
                %s144 = sphi %s125, %s125
              $region35: #{dec_upsample_block.1} parent=31 // loop_header_branch
                %141 = sbr.rel (%p139) target = $region39
              $region36: #{dec_upsample_block.1} parent=31 // loop_body
                %v145 = vld [vmem:[%s143] sm:$0xff]
                %146 = vst [vmem:[%s144] sm:$0xff] %v145
                %v147 = vld [vmem:[%s143 + $0x8] sm:$0xff]
                %148 = vst [vmem:[%s144 + $0x8] sm:$0xff] %v147
                %v149 = vld [vmem:[%s143 + $0x3c] sm:$0xff]
                %150 = vst [vmem:[%s144 + $0x14] sm:$0xff] %v149
                %v151 = vld [vmem:[%s143 + $0x44] sm:$0xff]
                %152 = vst [vmem:[%s144 + $0x1c] sm:$0xff] %v151
              $region37: #{dec_upsample_block.1} parent=31 // loop_footer
                %s142 = sadd.s32 1, %s138
              $region38: #{dec_upsample_block.1} parent=31 // loop_footer_branch
                %137 = sbr.rel target = $region34
              $region39: #{dec_upsample_block.1} parent=31 // loop_exit
                _
              %s154 = ssub.s32 16, 1
              loop: start=0, step=1, limit=1
              $region40: #{dec_upsample_block.1} parent=31 // loop_pre_header
                _
              $region41: #{dec_upsample_block.1} parent=31 // loop_header
                %s156 = sphi 0, %s160
                %p157 = scmp.ge.s32.totalorder %s156, 1
                %s161 = sphi %s135, %s135
                %s162 = sphi %s136, %s136
              $region42: #{dec_upsample_block.1} parent=31 // loop_header_branch
                %159 = sbr.rel (%p157) target = $region46
              $region43: #{dec_upsample_block.1} parent=31 // loop_body
                %v163 = vld [vmem:[%s161] sm:%s154]
                %164 = vst [vmem:[%s162] sm:%s154] %v163
                %v165 = vld [vmem:[%s161 + $0x3c] sm:%s154]
                %166 = vst [vmem:[%s162 + $0x14] sm:%s154] %v165
              $region44: #{dec_upsample_block.1} parent=31 // loop_footer
                %s160 = sadd.s32 1, %s156
              $region45: #{dec_upsample_block.1} parent=31 // loop_footer_branch
                %155 = sbr.rel target = $region41
              $region46: #{dec_upsample_block.1} parent=31 // loop_exit
                _
            $region32: #{dec_upsample_block.1} parent=27 // pred_fallthru
              _
          $region28: #{dec_upsample_block.1} parent=23 // pred_fallthru
            _
          %167 = vnop
        $region24: #{dec_upsample_block.1} parent=19 // pred_fallthru
          _
      $region20: #{dec_upsample_block.1} parent=5 // pred_fallthru
        _
      %p168 = scmp.le.s32.totalorder 1, %s8
      %p169 = scmp.lt.s32.totalorder %s8, 7
      %p170 = pnand %p168, %p169
      %p171 = pneg %p170
      // Predicated region
      $region47: #{dec_upsample_block.1} parent=5 // pred_check
        _
      $region48: #{dec_upsample_block.1} parent=5 // pred_check_branch
        %173 = sbr.rel (%p170) target = $region50
      $region49: #{dec_upsample_block.1} parent=5 // pred_region
        %s174 = ssub.s32 %s8, 1
        %s175 = sand.u32 %s35, 1
        %s176 = sand.u32 %s35, 1
        %s177 = smul.addr %s176, 40
        %s178 = scalar_lea.vmem [#allocation3], %s177
        // Predicated region
        $region51: #{dec_upsample_block.1} parent=49 // pred_check
          %p179 = pneg %p48
        $region52: #{dec_upsample_block.1} parent=49 // pred_check_branch
          %181 = sbr.rel (%p179) target = $region54
        $region53: #{dec_upsample_block.1} parent=49 // pred_region
          _
        $region54: #{dec_upsample_block.1} parent=49 // pred_fallthru
          _
        %s182 = sand.u32 %s35, 1
        %s183 = sand.u32 %s35, 1
        %s184 = smul.addr %s183, 40
        %s185 = scalar_lea.vmem [#allocation3], %s184
        %p186 = pneg %p48
        %p187 = pneg %p45
        %p188 = pneg %p69
        %p189 = pneg %p66
        %p190 = pneg %p97
        %p191 = pneg %p94
        %s192 = smul.u32 4, %s18
        %p193 = scmp.lt.s32.totalorder %s17, 1
        %s194 = scalar_select %p193, %s17, 1
        %p195 = scmp.lt.s32.totalorder %s192, 11
        %s196 = scalar_select %p195, %s192, 11
        %s197 = smul.addr %s194, 12
        %s198 = sadd.s32 %s196, %s197
        %s199 = smul.addr %s198, 8
        %s200 = scalar_lea.vmem %s2, %s199
        %s201 = smul.u32 5, %s18
        %s202 = smul.u32 4, %s18
        %p203 = scmp.lt.s32.totalorder %s17, 1
        %s204 = scalar_select %p203, %s17, 1
        %p205 = scmp.lt.s32.totalorder %s202, 11
        %s206 = scalar_select %p205, %s202, 11
        %s207 = smul.addr %s204, 12
        %s208 = sadd.s32 %s206, %s207
        %s209 = smul.addr %s208, 8
        %s210 = scalar_lea.vmem %s2, %s209
        %s211 = smul.u32 4, %s18
        %v214 = vld [vmem:[%s178] sm:$0xff]
        %v215 = vld [vmem:[%s178 + $0x8] sm:$0xff]
        %v216 = vld [vmem:[%s178 + $0x14] sm:$0xff]
        %v217 = vld [vmem:[%s178 + $0x1c] sm:$0xff]
        %218 = vst [vmem:[#allocation2] sm:$0xff] %v214
        %219 = vst [vmem:[#allocation2 + $0x8] sm:$0xff] %v215
        %220 = vst [vmem:[#allocation2 + $0x10] sm:$0xff] %v216
        %221 = vst [vmem:[#allocation2 + $0x18] sm:$0xff] %v217
        %v222 = vld [vmem:[%s178] sm:$0xff]
        %v223 = vld [vmem:[%s178 + $0x8] sm:$0xff]
        %v224 = vld [vmem:[%s178 + $0x10] sm:$0xf]
        %v225 = vld [vmem:[%s178 + $0x14] sm:$0xff]
        %v226 = vld [vmem:[%s178 + $0x1c] sm:$0xff]
        %v227 = vld [vmem:[%s178 + $0x24] sm:$0xf]
        %234 = vrot.lane.b32.xlu0 %v222, 127
        %v235 = vpop.permute.xlu0 %234
        %236 = vrot.lane.b32.xlu0 %v223, 127
        %v237 = vpop.permute.xlu0 %236
        %238 = vrot.lane.b32.xlu0 %v224, 127
        %v239 = vpop.permute.xlu0 %238
        %240 = vrot.lane.b32.xlu0 %v225, 127
        %v241 = vpop.permute.xlu0 %240
        %242 = vrot.lane.b32.xlu0 %v226, 127
        %v243 = vpop.permute.xlu0 %242
        %244 = vrot.lane.b32.xlu0 %v227, 127
        %v245 = vpop.permute.xlu0 %244
        %v246 = vrot.slane %v235, 4
        %v247 = vrot.slane %v237, 4
        %v248 = vrot.slane %v239, 4
        %v249 = vrot.slane %v241, 4
        %v250 = vrot.slane %v243, 4
        %v251 = vrot.slane %v245, 4
        %vm252 = vcmask 1043456
        %v253 = vsel %vm252, %v246, %v247
        %vm254 = vcmask 1039360
        %v255 = vsel %vm254, %v235, %v253
        %v256 = vsel %vm252, %v247, %v248
        %v257 = vsel %vm254, %v237, %v256
        %v258 = vsel %vm252, %v249, %v250
        %v259 = vsel %vm254, %v241, %v258
        %v260 = vsel %vm252, %v250, %v251
        %v261 = vsel %vm254, %v243, %v260
        %266 = vst [vmem:[#allocation2 + $0x20] sm:$0xff] %v255
        %267 = vst [vmem:[#allocation2 + $0x28] sm:$0xff] %v257
        %268 = vst [vmem:[#allocation2 + $0x30] sm:$0xff] %v259
        %269 = vst [vmem:[#allocation2 + $0x38] sm:$0xff] %v261
        %v270 = vld [vmem:[%s178] sm:$0xff]
        %v271 = vld [vmem:[%s178 + $0x8] sm:$0xff]
        %v272 = vld [vmem:[%s178 + $0x10] sm:$0xf]
        %v273 = vld [vmem:[%s178 + $0x14] sm:$0xff]
        %v274 = vld [vmem:[%s178 + $0x1c] sm:$0xff]
        %v275 = vld [vmem:[%s178 + $0x24] sm:$0xf]
        %282 = vrot.lane.b32.xlu0 %v270, 126
        %v283 = vpop.permute.xlu0 %282
        %284 = vrot.lane.b32.xlu0 %v271, 126
        %v285 = vpop.permute.xlu0 %284
        %286 = vrot.lane.b32.xlu0 %v272, 126
        %v287 = vpop.permute.xlu0 %286
        %288 = vrot.lane.b32.xlu0 %v273, 126
        %v289 = vpop.permute.xlu0 %288
        %290 = vrot.lane.b32.xlu0 %v274, 126
        %v291 = vpop.permute.xlu0 %290
        %292 = vrot.lane.b32.xlu0 %v275, 126
        %v293 = vpop.permute.xlu0 %292
        %v294 = vrot.slane %v283, 4
        %v295 = vrot.slane %v285, 4
        %v296 = vrot.slane %v287, 4
        %v297 = vrot.slane %v289, 4
        %v298 = vrot.slane %v291, 4
        %v299 = vrot.slane %v293, 4
        %v300 = vsel %vm252, %v294, %v295
        %vm301 = vcmask 1031168
        %v302 = vsel %vm301, %v283, %v300
        %v303 = vsel %vm252, %v295, %v296
        %v304 = vsel %vm301, %v285, %v303
        %v305 = vsel %vm252, %v297, %v298
        %v306 = vsel %vm301, %v289, %v305
        %v307 = vsel %vm252, %v298, %v299
        %v308 = vsel %vm301, %v291, %v307
        %313 = vst [vmem:[#allocation2 + $0x40] sm:$0xff] %v302
        %314 = vst [vmem:[#allocation2 + $0x48] sm:$0xff] %v304
        %315 = vst [vmem:[#allocation2 + $0x50] sm:$0xff] %v306
        %316 = vst [vmem:[#allocation2 + $0x58] sm:$0xff] %v308
        %v317 = vld [vmem:[%s178] sm:$0xff]
        %v318 = vld [vmem:[%s178 + $0x8] sm:$0xff]
        %v319 = vld [vmem:[%s178 + $0x10] sm:$0xf]
        %v320 = vld [vmem:[%s178 + $0x14] sm:$0xff]
        %v321 = vld [vmem:[%s178 + $0x1c] sm:$0xff]
        %v322 = vld [vmem:[%s178 + $0x24] sm:$0xf]
        %329 = vrot.lane.b32.xlu0 %v317, 94
        %v330 = vpop.permute.xlu0 %329
        %331 = vrot.lane.b32.xlu0 %v318, 94
        %v332 = vpop.permute.xlu0 %331
        %333 = vrot.lane.b32.xlu0 %v319, 94
        %v334 = vpop.permute.xlu0 %333
        %335 = vrot.lane.b32.xlu0 %v320, 94
        %v336 = vpop.permute.xlu0 %335
        %337 = vrot.lane.b32.xlu0 %v321, 94
        %v338 = vpop.permute.xlu0 %337
        %339 = vrot.lane.b32.xlu0 %v322, 94
        %v340 = vpop.permute.xlu0 %339
        %v341 = vrot.slane %v330, 4
        %v342 = vrot.slane %v332, 4
        %v343 = vrot.slane %v334, 4
        %v344 = vrot.slane %v336, 4
        %v345 = vrot.slane %v338, 4
        %v346 = vrot.slane %v340, 4
        %v347 = vsel %vm252, %v341, %v342
        %vm348 = vcmask 769024
        %v349 = vsel %vm348, %v330, %v347
        %v350 = vsel %vm252, %v342, %v343
        %v351 = vsel %vm348, %v332, %v350
        %v352 = vsel %vm252, %v344, %v345
        %v353 = vsel %vm348, %v336, %v352
        %v354 = vsel %vm252, %v345, %v346
        %v355 = vsel %vm348, %v338, %v354
        %360 = vst [vmem:[#allocation2 + $0x60] sm:$0xff] %v349
        %361 = vst [vmem:[#allocation2 + $0x68] sm:$0xff] %v351
        %362 = vst [vmem:[#allocation2 + $0x70] sm:$0xff] %v353
        %363 = vst [vmem:[#allocation2 + $0x78] sm:$0xff] %v355
        %v364 = vld [vmem:[%s178] sm:$0xff]
        %v365 = vld [vmem:[%s178 + $0x8] sm:$0xff]
        %v366 = vld [vmem:[%s178 + $0x10] sm:$0xf]
        %v367 = vld [vmem:[%s178 + $0x14] sm:$0xff]
        %v368 = vld [vmem:[%s178 + $0x1c] sm:$0xff]
        %v369 = vld [vmem:[%s178 + $0x24] sm:$0xf]
        %376 = vrot.lane.b32.xlu0 %v364, 93
        %v377 = vpop.permute.xlu0 %376
        %378 = vrot.lane.b32.xlu0 %v365, 93
        %v379 = vpop.permute.xlu0 %378
        %380 = vrot.lane.b32.xlu0 %v366, 93
        %v381 = vpop.permute.xlu0 %380
        %382 = vrot.lane.b32.xlu0 %v367, 93
        %v383 = vpop.permute.xlu0 %382
        %384 = vrot.lane.b32.xlu0 %v368, 93
        %v385 = vpop.permute.xlu0 %384
        %386 = vrot.lane.b32.xlu0 %v369, 93
        %v387 = vpop.permute.xlu0 %386
        %v388 = vrot.slane %v377, 4
        %v389 = vrot.slane %v379, 4
        %v390 = vrot.slane %v381, 4
        %v391 = vrot.slane %v383, 4
        %v392 = vrot.slane %v385, 4
        %v393 = vrot.slane %v387, 4
        %v394 = vsel %vm252, %v388, %v389
        %vm395 = vcmask 760832
        %v396 = vsel %vm395, %v377, %v394
        %v397 = vsel %vm252, %v389, %v390
        %v398 = vsel %vm395, %v379, %v397
        %v399 = vsel %vm252, %v391, %v392
        %v400 = vsel %vm395, %v383, %v399
        %v401 = vsel %vm252, %v392, %v393
        %v402 = vsel %vm395, %v385, %v401
        %407 = vst [vmem:[#allocation2 + $0x80] sm:$0xff] %v396
        %408 = vst [vmem:[#allocation2 + $0x88] sm:$0xff] %v398
        %409 = vst [vmem:[#allocation2 + $0x90] sm:$0xff] %v400
        %410 = vst [vmem:[#allocation2 + $0x98] sm:$0xff] %v402
        %v411 = vld [vmem:[%s178] sm:$0xff]
        %v412 = vld [vmem:[%s178 + $0x8] sm:$0xff]
        %v413 = vld [vmem:[%s178 + $0x10] sm:$0xf]
        %v414 = vld [vmem:[%s178 + $0x14] sm:$0xff]
        %v415 = vld [vmem:[%s178 + $0x1c] sm:$0xff]
        %v416 = vld [vmem:[%s178 + $0x24] sm:$0xf]
        %423 = vrot.lane.b32.xlu0 %v411, 92
        %v424 = vpop.permute.xlu0 %423
        %425 = vrot.lane.b32.xlu0 %v412, 92
        %v426 = vpop.permute.xlu0 %425
        %427 = vrot.lane.b32.xlu0 %v413, 92
        %v428 = vpop.permute.xlu0 %427
        %429 = vrot.lane.b32.xlu0 %v414, 92
        %v430 = vpop.permute.xlu0 %429
        %431 = vrot.lane.b32.xlu0 %v415, 92
        %v432 = vpop.permute.xlu0 %431
        %433 = vrot.lane.b32.xlu0 %v416, 92
        %v434 = vpop.permute.xlu0 %433
        %v435 = vrot.slane %v424, 4
        %v436 = vrot.slane %v426, 4
        %v437 = vrot.slane %v428, 4
        %v438 = vrot.slane %v430, 4
        %v439 = vrot.slane %v432, 4
        %v440 = vrot.slane %v434, 4
        %v441 = vsel %vm252, %v435, %v436
        %vm442 = vcmask 752640
        %v443 = vsel %vm442, %v424, %v441
        %v444 = vsel %vm252, %v436, %v437
        %v445 = vsel %vm442, %v426, %v444
        %v446 = vsel %vm252, %v438, %v439
        %v447 = vsel %vm442, %v430, %v446
        %v448 = vsel %vm252, %v439, %v440
        %v449 = vsel %vm442, %v432, %v448
        %454 = vst [vmem:[#allocation2 + $0xa0] sm:$0xff] %v443
        %455 = vst [vmem:[#allocation2 + $0xa8] sm:$0xff] %v445
        %456 = vst [vmem:[#allocation2 + $0xb0] sm:$0xff] %v447
        %457 = vst [vmem:[#allocation2 + $0xb8] sm:$0xff] %v449
        %v458 = vld [vmem:[%s178] sm:$0xff]
        %v459 = vld [vmem:[%s178 + $0x8] sm:$0xff]
        %v460 = vld [vmem:[%s178 + $0x10] sm:$0xf]
        %v461 = vld [vmem:[%s178 + $0x14] sm:$0xff]
        %v462 = vld [vmem:[%s178 + $0x1c] sm:$0xff]
        %v463 = vld [vmem:[%s178 + $0x24] sm:$0xf]
        %470 = vrot.lane.b32.xlu0 %v458, 60
        %v471 = vpop.permute.xlu0 %470
        %472 = vrot.lane.b32.xlu0 %v459, 60
        %v473 = vpop.permute.xlu0 %472
        %474 = vrot.lane.b32.xlu0 %v460, 60
        %v475 = vpop.permute.xlu0 %474
        %476 = vrot.lane.b32.xlu0 %v461, 60
        %v477 = vpop.permute.xlu0 %476
        %478 = vrot.lane.b32.xlu0 %v462, 60
        %v479 = vpop.permute.xlu0 %478
        %480 = vrot.lane.b32.xlu0 %v463, 60
        %v481 = vpop.permute.xlu0 %480
        %v482 = vrot.slane %v471, 4
        %v483 = vrot.slane %v473, 4
        %v484 = vrot.slane %v475, 4
        %v485 = vrot.slane %v477, 4
        %v486 = vrot.slane %v479, 4
        %v487 = vrot.slane %v481, 4
        %v488 = vsel %vm252, %v482, %v483
        %vm489 = vcmask 490496
        %v490 = vsel %vm489, %v471, %v488
        %v491 = vsel %vm252, %v483, %v484
        %v492 = vsel %vm489, %v473, %v491
        %v493 = vsel %vm252, %v485, %v486
        %v494 = vsel %vm489, %v477, %v493
        %v495 = vsel %vm252, %v486, %v487
        %v496 = vsel %vm489, %v479, %v495
        %501 = vst [vmem:[#allocation2 + $0xc0] sm:$0xff] %v490
        %502 = vst [vmem:[#allocation2 + $0xc8] sm:$0xff] %v492
        %503 = vst [vmem:[#allocation2 + $0xd0] sm:$0xff] %v494
        %504 = vst [vmem:[#allocation2 + $0xd8] sm:$0xff] %v496
        %v505 = vld [vmem:[%s178] sm:$0xff]
        %v506 = vld [vmem:[%s178 + $0x8] sm:$0xff]
        %v507 = vld [vmem:[%s178 + $0x10] sm:$0xf]
        %v508 = vld [vmem:[%s178 + $0x14] sm:$0xff]
        %v509 = vld [vmem:[%s178 + $0x1c] sm:$0xff]
        %v510 = vld [vmem:[%s178 + $0x24] sm:$0xf]
        %517 = vrot.lane.b32.xlu0 %v505, 59
        %v518 = vpop.permute.xlu0 %517
        %519 = vrot.lane.b32.xlu0 %v506, 59
        %v520 = vpop.permute.xlu0 %519
        %521 = vrot.lane.b32.xlu0 %v507, 59
        %v522 = vpop.permute.xlu0 %521
        %523 = vrot.lane.b32.xlu0 %v508, 59
        %v524 = vpop.permute.xlu0 %523
        %525 = vrot.lane.b32.xlu0 %v509, 59
        %v526 = vpop.permute.xlu0 %525
        %527 = vrot.lane.b32.xlu0 %v510, 59
        %v528 = vpop.permute.xlu0 %527
        %v529 = vrot.slane %v518, 4
        %v530 = vrot.slane %v520, 4
        %v531 = vrot.slane %v522, 4
        %v532 = vrot.slane %v524, 4
        %v533 = vrot.slane %v526, 4
        %v534 = vrot.slane %v528, 4
        %v535 = vsel %vm252, %v529, %v530
        %vm536 = vcmask 482304
        %v537 = vsel %vm536, %v518, %v535
        %v538 = vsel %vm252, %v530, %v531
        %v539 = vsel %vm536, %v520, %v538
        %v540 = vsel %vm252, %v532, %v533
        %v541 = vsel %vm536, %v524, %v540
        %v542 = vsel %vm252, %v533, %v534
        %v543 = vsel %vm536, %v526, %v542
        %548 = vst [vmem:[#allocation2 + $0xe0] sm:$0xff] %v537
        %549 = vst [vmem:[#allocation2 + $0xe8] sm:$0xff] %v539
        %550 = vst [vmem:[#allocation2 + $0xf0] sm:$0xff] %v541
        %551 = vst [vmem:[#allocation2 + $0xf8] sm:$0xff] %v543
        %v552 = vld [vmem:[%s178] sm:$0xff]
        %v553 = vld [vmem:[%s178 + $0x8] sm:$0xff]
        %v554 = vld [vmem:[%s178 + $0x10] sm:$0xf]
        %v555 = vld [vmem:[%s178 + $0x14] sm:$0xff]
        %v556 = vld [vmem:[%s178 + $0x1c] sm:$0xff]
        %v557 = vld [vmem:[%s178 + $0x24] sm:$0xf]
        %564 = vrot.lane.b32.xlu0 %v552, 58
        %v565 = vpop.permute.xlu0 %564
        %566 = vrot.lane.b32.xlu0 %v553, 58
        %v567 = vpop.permute.xlu0 %566
        %568 = vrot.lane.b32.xlu0 %v554, 58
        %v569 = vpop.permute.xlu0 %568
        %570 = vrot.lane.b32.xlu0 %v555, 58
        %v571 = vpop.permute.xlu0 %570
        %572 = vrot.lane.b32.xlu0 %v556, 58
        %v573 = vpop.permute.xlu0 %572
        %574 = vrot.lane.b32.xlu0 %v557, 58
        %v575 = vpop.permute.xlu0 %574
        %v576 = vrot.slane %v565, 4
        %v577 = vrot.slane %v567, 4
        %v578 = vrot.slane %v569, 4
        %v579 = vrot.slane %v571, 4
        %v580 = vrot.slane %v573, 4
        %v581 = vrot.slane %v575, 4
        %v582 = vsel %vm252, %v576, %v577
        %vm583 = vcmask 474112
        %v584 = vsel %vm583, %v565, %v582
        %v585 = vsel %vm252, %v577, %v578
        %v586 = vsel %vm583, %v567, %v585
        %v587 = vsel %vm252, %v579, %v580
        %v588 = vsel %vm583, %v571, %v587
        %v589 = vsel %vm252, %v580, %v581
        %v590 = vsel %vm583, %v573, %v589
        %595 = vst [vmem:[#allocation2 + $0x100] sm:$0xff] %v584
        %596 = vst [vmem:[#allocation2 + $0x108] sm:$0xff] %v586
        %597 = vst [vmem:[#allocation2 + $0x110] sm:$0xff] %v588
        %598 = vst [vmem:[#allocation2 + $0x118] sm:$0xff] %v590
        %599 = vst [vmem:[#allocation2 + $0x120] sm:$0xff] 1065369472
        %600 = vst [vmem:[#allocation2 + $0x128] sm:$0xff] 1065369472
        %601 = vst [vmem:[#allocation2 + $0x130] sm:$0xff] 1065369472
        %602 = vst [vmem:[#allocation2 + $0x138] sm:$0xff] 1065369472
        %v603 = vld [vmem:[%s1] sm:$0xff]
        %v604 = vld [vmem:[#allocation2] sm:$0xff]
        %v605 = vld [vmem:[#allocation2 + $0x8] sm:$0xff]
        %v606 = vld [vmem:[#allocation2 + $0x10] sm:$0xff]
        %v607 = vld [vmem:[#allocation2 + $0x18] sm:$0xff]
        %v608 = vld [vmem:[#allocation2 + $0x20] sm:$0xff]
        %v609 = vld [vmem:[#allocation2 + $0x28] sm:$0xff]
        %v610 = vld [vmem:[#allocation2 + $0x30] sm:$0xff]
        %v611 = vld [vmem:[#allocation2 + $0x38] sm:$0xff]
        %v612 = vld [vmem:[#allocation2 + $0x40] sm:$0xff]
        %v613 = vld [vmem:[#allocation2 + $0x48] sm:$0xff]
        %v614 = vld [vmem:[#allocation2 + $0x50] sm:$0xff]
        %v615 = vld [vmem:[#allocation2 + $0x58] sm:$0xff]
        %v616 = vld [vmem:[#allocation2 + $0x60] sm:$0xff]
        %v617 = vld [vmem:[#allocation2 + $0x68] sm:$0xff]
        %v618 = vld [vmem:[#allocation2 + $0x70] sm:$0xff]
        %v619 = vld [vmem:[#allocation2 + $0x78] sm:$0xff]
        %v620 = vld [vmem:[#allocation2 + $0x80] sm:$0xff]
        %v621 = vld [vmem:[#allocation2 + $0x88] sm:$0xff]
        %v622 = vld [vmem:[#allocation2 + $0x90] sm:$0xff]
        %v623 = vld [vmem:[#allocation2 + $0x98] sm:$0xff]
        %v624 = vld [vmem:[#allocation2 + $0xa0] sm:$0xff]
        %v625 = vld [vmem:[#allocation2 + $0xa8] sm:$0xff]
        %v626 = vld [vmem:[#allocation2 + $0xb0] sm:$0xff]
        %v627 = vld [vmem:[#allocation2 + $0xb8] sm:$0xff]
        %v628 = vld [vmem:[#allocation2 + $0xc0] sm:$0xff]
        %v629 = vld [vmem:[#allocation2 + $0xc8] sm:$0xff]
        %v630 = vld [vmem:[#allocation2 + $0xd0] sm:$0xff]
        %v631 = vld [vmem:[#allocation2 + $0xd8] sm:$0xff]
        %v632 = vld [vmem:[#allocation2 + $0xe0] sm:$0xff]
        %v633 = vld [vmem:[#allocation2 + $0xe8] sm:$0xff]
        %v634 = vld [vmem:[#allocation2 + $0xf0] sm:$0xff]
        %v635 = vld [vmem:[#allocation2 + $0xf8] sm:$0xff]
        %v636 = vld [vmem:[#allocation2 + $0x100] sm:$0xff]
        %v637 = vld [vmem:[#allocation2 + $0x108] sm:$0xff]
        %v638 = vld [vmem:[#allocation2 + $0x110] sm:$0xff]
        %v639 = vld [vmem:[#allocation2 + $0x118] sm:$0xff]
        %v640 = vld [vmem:[#allocation2 + $0x120] sm:$0xff]
        %v641 = vld [vmem:[#allocation2 + $0x128] sm:$0xff]
        %v642 = vld [vmem:[#allocation2 + $0x130] sm:$0xff]
        %v643 = vld [vmem:[#allocation2 + $0x138] sm:$0xff]
        %v645 = vunpack.c.l.b16 %v603
        %v646 = vunpack.c.h.b16 %v603
        %v647 = vpack.c.b16 %v645, %v645
        %v648 = vpack.c.b16 %v646, %v646
        %v690 = vunpack.c.l.b16 %v604
        %v691 = vunpack.c.h.b16 %v604
        %v692 = vunpack.c.l.b16 %v605
        %v693 = vunpack.c.h.b16 %v605
        %v694 = vunpack.c.l.b16 %v606
        %v695 = vunpack.c.h.b16 %v606
        %v696 = vunpack.c.l.b16 %v607
        %v697 = vunpack.c.h.b16 %v607
        %v698 = vunpack.c.l.b16 %v608
        %v699 = vunpack.c.h.b16 %v608
        %v700 = vunpack.c.l.b16 %v609
        %v701 = vunpack.c.h.b16 %v609
        %v702 = vunpack.c.l.b16 %v610
        %v703 = vunpack.c.h.b16 %v610
        %v704 = vunpack.c.l.b16 %v611
        %v705 = vunpack.c.h.b16 %v611
        %v706 = vunpack.c.l.b16 %v612
        %v707 = vunpack.c.h.b16 %v612
        %v708 = vunpack.c.l.b16 %v613
        %v709 = vunpack.c.h.b16 %v613
        %v710 = vunpack.c.l.b16 %v614
        %v711 = vunpack.c.h.b16 %v614
        %v712 = vunpack.c.l.b16 %v615
        %v713 = vunpack.c.h.b16 %v615
        %v714 = vunpack.c.l.b16 %v616
        %v715 = vunpack.c.h.b16 %v616
        %v716 = vunpack.c.l.b16 %v617
        %v717 = vunpack.c.h.b16 %v617
        %v718 = vunpack.c.l.b16 %v618
        %v719 = vunpack.c.h.b16 %v618
        %v720 = vunpack.c.l.b16 %v619
        %v721 = vunpack.c.h.b16 %v619
        %v722 = vunpack.c.l.b16 %v620
        %v723 = vunpack.c.h.b16 %v620
        %v724 = vunpack.c.l.b16 %v621
        %v725 = vunpack.c.h.b16 %v621
        %v726 = vunpack.c.l.b16 %v622
        %v727 = vunpack.c.h.b16 %v622
        %v728 = vunpack.c.l.b16 %v623
        %v729 = vunpack.c.h.b16 %v623
        %v730 = vunpack.c.l.b16 %v624
        %v731 = vunpack.c.h.b16 %v624
        %v732 = vunpack.c.l.b16 %v625
        %v733 = vunpack.c.h.b16 %v625
        %v734 = vunpack.c.l.b16 %v626
        %v735 = vunpack.c.h.b16 %v626
        %v736 = vunpack.c.l.b16 %v627
        %v737 = vunpack.c.h.b16 %v627
        %v738 = vunpack.c.l.b16 %v628
        %v739 = vunpack.c.h.b16 %v628
        %v740 = vunpack.c.l.b16 %v629
        %v741 = vunpack.c.h.b16 %v629
        %v742 = vunpack.c.l.b16 %v630
        %v743 = vunpack.c.h.b16 %v630
        %v744 = vunpack.c.l.b16 %v631
        %v745 = vunpack.c.h.b16 %v631
        %v746 = vunpack.c.l.b16 %v632
        %v747 = vunpack.c.h.b16 %v632
        %v748 = vunpack.c.l.b16 %v633
        %v749 = vunpack.c.h.b16 %v633
        %v750 = vunpack.c.l.b16 %v634
        %v751 = vunpack.c.h.b16 %v634
        %v752 = vunpack.c.l.b16 %v635
        %v753 = vunpack.c.h.b16 %v635
        %v754 = vunpack.c.l.b16 %v636
        %v755 = vunpack.c.h.b16 %v636
        %v756 = vunpack.c.l.b16 %v637
        %v757 = vunpack.c.h.b16 %v637
        %v758 = vunpack.c.l.b16 %v638
        %v759 = vunpack.c.h.b16 %v638
        %v760 = vunpack.c.l.b16 %v639
        %v761 = vunpack.c.h.b16 %v639
        %v762 = vunpack.c.l.b16 %v640
        %v763 = vunpack.c.h.b16 %v640
        %v764 = vunpack.c.l.b16 %v641
        %v765 = vunpack.c.h.b16 %v641
        %v766 = vunpack.c.l.b16 %v642
        %v767 = vunpack.c.h.b16 %v642
        %v768 = vunpack.c.l.b16 %v643
        %v769 = vunpack.c.h.b16 %v643
        %v770 = vpack.c.b16 %v694, %v690
        %v771 = vpack.c.b16 %v695, %v691
        %v772 = vpack.c.b16 %v696, %v692
        %v773 = vpack.c.b16 %v697, %v693
        %v774 = vpack.c.b16 %v702, %v698
        %v775 = vpack.c.b16 %v703, %v699
        %v776 = vpack.c.b16 %v704, %v700
        %v777 = vpack.c.b16 %v705, %v701
        %v778 = vpack.c.b16 %v710, %v706
        %v779 = vpack.c.b16 %v711, %v707
        %v780 = vpack.c.b16 %v712, %v708
        %v781 = vpack.c.b16 %v713, %v709
        %v782 = vpack.c.b16 %v718, %v714
        %v783 = vpack.c.b16 %v719, %v715
        %v784 = vpack.c.b16 %v720, %v716
        %v785 = vpack.c.b16 %v721, %v717
        %v786 = vpack.c.b16 %v726, %v722
        %v787 = vpack.c.b16 %v727, %v723
        %v788 = vpack.c.b16 %v728, %v724
        %v789 = vpack.c.b16 %v729, %v725
        %v790 = vpack.c.b16 %v734, %v730
        %v791 = vpack.c.b16 %v735, %v731
        %v792 = vpack.c.b16 %v736, %v732
        %v793 = vpack.c.b16 %v737, %v733
        %v794 = vpack.c.b16 %v742, %v738
        %v795 = vpack.c.b16 %v743, %v739
        %v796 = vpack.c.b16 %v744, %v740
        %v797 = vpack.c.b16 %v745, %v741
        %v798 = vpack.c.b16 %v750, %v746
        %v799 = vpack.c.b16 %v751, %v747
        %v800 = vpack.c.b16 %v752, %v748
        %v801 = vpack.c.b16 %v753, %v749
        %v802 = vpack.c.b16 %v758, %v754
        %v803 = vpack.c.b16 %v759, %v755
        %v804 = vpack.c.b16 %v760, %v756
        %v805 = vpack.c.b16 %v761, %v757
        %v806 = vpack.c.b16 %v766, %v762
        %v807 = vpack.c.b16 %v767, %v763
        %v808 = vpack.c.b16 %v768, %v764
        %v809 = vpack.c.b16 %v769, %v765
        %vm850 = vcmask 261120
        %v852 = vsel %vm850, %v648, 0
        %854 = vmatprep.subr.bf16.mxu0 %v799
        %855 = vmatpush1.bf16.msra.mxu0 %v798
        %856 = vmatprep.subr.bf16.mxu0 %v795
        %857 = vmatpush1.bf16.msra.mxu0 %v794
        %858 = vmatprep.subr.bf16.mxu0 %v791
        %859 = vmatpush1.bf16.msra.mxu0 %v790
        %860 = vmatprep.subr.bf16.mxu0 %v787
        %861 = vmatpush1.bf16.msra.mxu0 %v786
        %862 = vmatprep.subr.bf16.mxu0 %v783
        %863 = vmatpush1.bf16.msra.mxu0 %v782
        %864 = vmatprep.subr.bf16.mxu0 %v779
        %865 = vmatpush1.bf16.msra.mxu0 %v778
        %866 = vmatprep.subr.bf16.mxu0 %v775
        %867 = vmatpush1.bf16.msra.mxu0 %v774
        %868 = vmatprep.subr.bf16.mxu0 %v771
        %869 = vmatpush1.bf16.msra.mxu0 %v770
        %870 = vmatprep.subr.bf16.mxu0 0
        %871 = vmatpush2.bf16.msra.mxu0 0
        %872 = vmatprep.subr.bf16.mxu0 0
        %873 = vmatpush2.bf16.msra.mxu0 0
        %874 = vmatprep.subr.bf16.mxu0 0
        %875 = vmatpush2.bf16.msra.mxu0 0
        %876 = vmatprep.subr.bf16.mxu0 0
        %877 = vmatpush2.bf16.msra.mxu0 0
        %878 = vmatprep.subr.bf16.mxu0 0
        %879 = vmatpush2.bf16.msra.mxu0 0
        %880 = vmatprep.subr.bf16.mxu0 0
        %881 = vmatpush2.bf16.msra.mxu0 0
        %882 = vmatprep.subr.bf16.mxu0 %v807
        %883 = vmatpush2.bf16.msra.mxu0 %v806
        %884 = vmatprep.subr.bf16.mxu0 %v803
        %885 = vmatpush2.bf16.msra.mxu0 %v802
        %886 = vmatprep.mubr.bf16.mxu0 %v852
        %887 = vmatmul.mubr.bf16.gmra.mxu0 %v647
        %v888 = vpop.f32.mrf.mxu0
        %v889 = vadd.f32 0.0, %v888
        %v890 = vpop.f32.mrf.mxu0
        %v891 = vadd.f32 0.0, %v890
        %v892 = vpop.f32.mrf.mxu0
        %v893 = vpop.f32.mrf.mxu0
        %894 = vdwg.mxu0
        %895 = vmatprep.subr.bf16.mxu0 %v801
        %896 = vmatpush1.bf16.msra.mxu0 %v800
        %897 = vmatprep.subr.bf16.mxu0 %v797
        %898 = vmatpush1.bf16.msra.mxu0 %v796
        %899 = vmatprep.subr.bf16.mxu0 %v793
        %900 = vmatpush1.bf16.msra.mxu0 %v792
        %901 = vmatprep.subr.bf16.mxu0 %v789
        %902 = vmatpush1.bf16.msra.mxu0 %v788
        %903 = vmatprep.subr.bf16.mxu0 %v785
        %904 = vmatpush1.bf16.msra.mxu0 %v784
        %905 = vmatprep.subr.bf16.mxu0 %v781
        %906 = vmatpush1.bf16.msra.mxu0 %v780
        %907 = vmatprep.subr.bf16.mxu0 %v777
        %908 = vmatpush1.bf16.msra.mxu0 %v776
        %909 = vmatprep.subr.bf16.mxu0 %v773
        %910 = vmatpush1.bf16.msra.mxu0 %v772
        %911 = vmatprep.subr.bf16.mxu0 0
        %912 = vmatpush2.bf16.msra.mxu0 0
        %913 = vmatprep.subr.bf16.mxu0 0
        %914 = vmatpush2.bf16.msra.mxu0 0
        %915 = vmatprep.subr.bf16.mxu0 0
        %916 = vmatpush2.bf16.msra.mxu0 0
        %917 = vmatprep.subr.bf16.mxu0 0
        %918 = vmatpush2.bf16.msra.mxu0 0
        %919 = vmatprep.subr.bf16.mxu0 0
        %920 = vmatpush2.bf16.msra.mxu0 0
        %921 = vmatprep.subr.bf16.mxu0 0
        %922 = vmatpush2.bf16.msra.mxu0 0
        %923 = vmatprep.subr.bf16.mxu0 %v809
        %924 = vmatpush2.bf16.msra.mxu0 %v808
        %925 = vmatprep.subr.bf16.mxu0 %v805
        %926 = vmatpush2.bf16.msra.mxu0 %v804
        %927 = vmatprep.mubr.bf16.mxu0 %v852
        %928 = vmatmul.mubr.bf16.gmra.mxu0 %v647
        %v929 = vpop.f32.mrf.mxu0
        %v930 = vadd.f32 0.0, %v929
        %v931 = vpop.f32.mrf.mxu0
        %v932 = vadd.f32 0.0, %v931
        %v933 = vpop.f32.mrf.mxu0
        %v934 = vpop.f32.mrf.mxu0
        %935 = vdwg.mxu0
        %936 = vst [vmem:[%s210] sm:$0xff] %v889
        %937 = vst [vmem:[%s210 + $0x8] sm:$0xff] %v891
        %938 = vst [vmem:[%s210 + $0x10] sm:$0xff] %v930
        %939 = vst [vmem:[%s210 + $0x18] sm:$0xff] %v932
        %s940 = smul.u32 4, %s18
        %p941 = scmp.lt.s32.totalorder %s17, 1
        %s942 = scalar_select %p941, %s17, 1
        %p943 = scmp.lt.s32.totalorder %s940, 11
        %s944 = scalar_select %p943, %s940, 11
        %s945 = smul.addr %s942, 12
        %s946 = sadd.s32 %s944, %s945
        %s947 = smul.addr %s946, 8
        %s948 = scalar_lea.vmem %s2, %s947
        // Predicated region
        $region55: #{dec_upsample_block.1} parent=49 // pred_check
          %p949 = pneg %p94
        $region56: #{dec_upsample_block.1} parent=49 // pred_check_branch
          %951 = sbr.rel (%p949) target = $region58
        $region57: #{dec_upsample_block.1} parent=49 // pred_region
          %s952 = smul.u32 4, %s18
        $region58: #{dec_upsample_block.1} parent=49 // pred_fallthru
          _
      $region50: #{dec_upsample_block.1} parent=5 // pred_fallthru
        _
      %p953 = scmp.le.s32.totalorder 2, %s8
      // Predicated region
      $region59: #{dec_upsample_block.1} parent=5 // pred_check
        %p954 = pneg %p953
      $region60: #{dec_upsample_block.1} parent=5 // pred_check_branch
        %956 = sbr.rel (%p954) target = $region62
      $region61: #{dec_upsample_block.1} parent=5 // pred_region
        %s957 = ssub.s32 %s8, 2
        // Predicated region
        $region63: #{dec_upsample_block.1} parent=61 // pred_check
          %p958 = pneg %p100
        $region64: #{dec_upsample_block.1} parent=61 // pred_check_branch
          %960 = sbr.rel (%p958) target = $region66
        $region65: #{dec_upsample_block.1} parent=61 // pred_region
          %s961 = smul.u32 4, %s20
          %p962 = scmp.lt.s32.totalorder %s19, 1
          %s963 = scalar_select %p962, %s19, 1
          %p964 = scmp.lt.s32.totalorder %s961, 11
          %s965 = scalar_select %p964, %s961, 11
          %s966 = smul.addr %s963, 12
          %s967 = sadd.s32 %s965, %s966
          %s968 = smul.addr %s967, 8
          %s969 = scalar_lea.vmem %s2, %s968
        $region66: #{dec_upsample_block.1} parent=61 // pred_fallthru
          _
      $region62: #{dec_upsample_block.1} parent=5 // pred_fallthru
        _
    $region6: #{dec_upsample_block.1} parent=1 // loop_footer
      %s12 = sadd.s32 1, %s8
    $region7: #{dec_upsample_block.1} parent=1 // loop_footer_branch
      %7 = sbr.rel target = $region3
    $region8: #{dec_upsample_block.1} parent=1 // loop_exit
      _

</llo_original>
